<compile_context>
chip_gen: v6e
topology: v6e:2x2x1
jax: 0.10.0
libtpu: 0.0.40
codegen_flags: <defaults>
</compile_context>

<pallas_src>
import functools
import math

import jax
import jax.numpy as jnp
from jax.experimental import pallas as pl
from jax.experimental.pallas import tpu as pltpu


def _mask_pool_kernel(x_ref, m_ref, out_ref, acc_ref, den_ref, *,
                      thw, hard_pooling, mask_threshold, logit_threshold, mxu_dtype):
    # x_ref:   (1, TC, THW)      feature block (native channel-major layout)
    # m_ref:   (1, HW_pad, Q)    FULL mask-logit slab for this batch (resident in VMEM)
    # out_ref: (1, TC, Q)        un-transposed output block
    # acc_ref: (TC, Q) f32       matmul accumulator (resident across the HW axis)
    # den_ref: (1, Q)  f32       mask-sum accumulator
    k = pl.program_id(2)

    @pl.when(k == 0)
    def _init():
        acc_ref[...] = jnp.zeros_like(acc_ref)
        den_ref[...] = jnp.zeros_like(den_ref)

    x = x_ref[0].astype(mxu_dtype)                       # (TC, THW) bf16 (or f32 if requested)

    start = pl.multiple_of(k * thw, thw)
    m_raw = m_ref[0, pl.ds(start, thw), :]               # (THW, Q), mask dtype

    if hard_pooling:
        if logit_threshold is not None:
            # sigmoid(m) > thr  <=>  m > logit(thr); skips the sigmoid entirely.
            m = (m_raw > jnp.asarray(logit_threshold, m_raw.dtype)).astype(mxu_dtype)
        else:
            # Degenerate thresholds (<=0 or >=1): literal compare.
            m = (jax.nn.sigmoid(m_raw.astype(jnp.float32))
                 > jnp.float32(mask_threshold)).astype(mxu_dtype)
    else:
        m = jax.nn.sigmoid(m_raw.astype(jnp.float32)).astype(mxu_dtype)

    # Denominator: sum over spatial positions, per query (f32).
    den_ref[...] += jnp.sum(m.astype(jnp.float32), axis=0, keepdims=True)      # (1, Q)

    # MXU matmul, f32 accumulation.
    acc_ref[...] += jnp.dot(x, m, preferred_element_type=jnp.float32)          # (TC, Q)

    @pl.when(k == pl.num_programs(2) - 1)
    def _finalize():
        inv = pl.reciprocal(den_ref[...] + jnp.float32(1e-8), approx=False)    # (1, Q)
        out_ref[0] = (acc_ref[...] * inv).astype(out_ref.dtype)


def _cdiv(a, b):
    return -(-a // b)


def _round_up(a, m):
    return _cdiv(a, m) * m


def _sublane_quantum(dtype):
    return max(8, 32 // jnp.dtype(dtype).itemsize)   # f32 -> 8, bf16 -> 16, int8 -> 32


def mask_pooling(x, mask, *, hard_pooling=True, mask_threshold=0.5,
                 thw_cap=4096, tc_cap=512, mxu_dtype=jnp.bfloat16,
                 vmem_cap_bytes=48 << 20):
    """x: (B, C, H, W); mask: (B, Q, H, W). Returns {'mask_pooled_features': (B, Q, C)}.

    mxu_dtype: dtype of the matmul operands (bf16 by default; accumulation is always
    f32). Pass jnp.float32 for bit-faithful f32 pooling (slower on the MXU).
    """
    B, C, H, W = x.shape
    Bm, Q, Hm, Wm = mask.shape
    assert (H, W) == (Hm, Wm) and B == Bm
    HW = H * W
    x_dtype = x.dtype
    if mxu_dtype is None:
        mxu_dtype = x_dtype

    # ----- HW tiling (+ padding to a multiple of the tile) -----
    nk = _cdiv(HW, thw_cap)
    if nk == 1:
        thw = HW                       # full-dim block: any size is legal
        hw_pad = HW
    else:
        thw = _round_up(_cdiv(HW, nk), 128)
        hw_pad = nk * thw

    # ----- C tiling (+ padding); force >= 2 parallel iterations when B == 1 (v7x) -----
    quantum = _sublane_quantum(x_dtype)
    nc = _cdiv(C, tc_cap)
    if B == 1 and nc < 2 and C >= 2 * quantum:
        nc = 2
    if nc == 1:
        tc = C                         # full-dim block
        c_pad = C
    else:
        tc = _round_up(_cdiv(C, nc), quantum)
        c_pad = nc * tc

    # ----- layout prep (no transpose of the big feature tensor) -----
    x_k = x.reshape(B, C, HW)
    if c_pad != C or hw_pad != HW:
        x_k = jnp.pad(x_k, ((0, 0), (0, c_pad - C), (0, hw_pad - HW)))
    m_k = jnp.transpose(mask.reshape(B, Q, HW), (0, 2, 1))        # (B, HW, Q)
    if hw_pad != HW:
        # Pad mask logits with a large NEGATIVE value: sigmoid -> 0, so padded pixels
        # contribute nothing to either numerator or denominator.
        m_k = jnp.pad(m_k, ((0, 0), (0, hw_pad - HW), (0, 0)), constant_values=-1e9)

    # Hard pooling: precompute logit(threshold) so the kernel skips the sigmoid.
    if hard_pooling and 0.0 < mask_threshold < 1.0:
        logit_threshold = math.log(mask_threshold / (1.0 - mask_threshold))
    else:
        logit_threshold = None

    # ----- explicit scoped-VMEM budget, capped for v7x headroom -----
    bytes_x = tc * thw * x_k.dtype.itemsize
    bytes_m = hw_pad * Q * m_k.dtype.itemsize
    bytes_o = tc * Q * x_k.dtype.itemsize
    bytes_scratch = (tc * Q + 8 * max(Q, 128)) * 4
    vmem_limit_bytes = int(min(vmem_cap_bytes,
                               max(32 << 20,
                                   2 * (bytes_x + bytes_m + bytes_o)
                                   + bytes_scratch + (4 << 20))))

    kernel = functools.partial(
        _mask_pool_kernel,
        thw=thw,
        hard_pooling=hard_pooling,
        mask_threshold=mask_threshold,
        logit_threshold=logit_threshold,
        mxu_dtype=mxu_dtype,
    )

    out_cq = pl.pallas_call(
        kernel,
        out_shape=jax.ShapeDtypeStruct((B, c_pad, Q), x_dtype),
        grid=(B, nc, nk),
        in_specs=[
            # x: streamed per (b, c, k) tile.
            pl.BlockSpec((1, tc, thw), lambda b, c, k: (b, c, k)),
            # mask: resident per batch (block index independent of c and k -> one DMA
            # per batch instead of one per channel tile).
            pl.BlockSpec((1, hw_pad, Q), lambda b, c, k: (b, 0, 0)),
        ],
        out_specs=pl.BlockSpec((1, tc, Q), lambda b, c, k: (b, c, 0)),
        scratch_shapes=[
            pltpu.VMEM((tc, Q), jnp.float32),   # matmul accumulator
            pltpu.VMEM((1, Q), jnp.float32),    # mask-sum accumulator
        ],
        compiler_params=pltpu.CompilerParams(
            dimension_semantics=("parallel", "parallel", "arbitrary"),
            vmem_limit_bytes=vmem_limit_bytes,
        ),
    )(x_k, m_k)

    # Tiny (B, C_pad, Q) -> (B, Q, C) transpose + un-pad (negligible next to the x stream).
    out = jnp.transpose(out_cq, (0, 2, 1))[:, :, :C]
    return {"mask_pooled_features": out}


def _reference(x, mask, *, hard_pooling=True, mask_threshold=0.5):
    m = jax.nn.sigmoid(mask.astype(jnp.float32))
    if hard_pooling:
        m = (m > mask_threshold).astype(jnp.float32)
    denorm = jnp.sum(m, axis=(-1, -2), keepdims=True) + 1e-8
    return jnp.einsum("bchw,bqhw->bqc", x.astype(jnp.float32), m / denorm)


if __name__ == "__main__":
    key = jax.random.PRNGKey(0)
    kx, km, kx2, km2 = jax.random.split(key, 4)

    # Case A: B=2, C=32, 16x16 spatial, Q=8.
    B, C, H, W, Q = 2, 32, 16, 16, 8
    x = jax.random.normal(kx, (B, C, H, W), dtype=jnp.float32)
    mask = jax.random.normal(km, (B, Q, H, W), dtype=jnp.float32)

    # Case B: B=1, C=20, 12x12 spatial, Q=8 — exercises C padding, HW padding,
    # the forced nc>=2 split (v7x megacore) and in-kernel mask slicing over k.
    B2, C2, H2, W2, Q2 = 1, 20, 12, 12, 8
    x2 = jax.random.normal(kx2, (B2, C2, H2, W2), dtype=jnp.float32)
    mask2 = jax.random.normal(km2, (B2, Q2, H2, W2), dtype=jnp.float32)

    cases = [
        # (x, mask, kwargs, atol, rtol)
        # default: bf16 MXU operands, single tile per batch
        (x, mask, dict(hard_pooling=True, mask_threshold=0.5), 2e-2, 2e-2),
        # f32 MXU, small tiles -> grid (2, 2, 2): exercises HW accumulation + C split
        (x, mask, dict(hard_pooling=True, mask_threshold=0.5,
                       mxu_dtype=jnp.float32, thw_cap=128, tc_cap=16), 1e-5, 1e-5),
        # soft pooling, f32 MXU, tiled
        (x, mask, dict(hard_pooling=False, mask_threshold=0.5,
                       mxu_dtype=jnp.float32, thw_cap=128, tc_cap=16), 1e-5, 1e-5),
        # soft pooling, bf16 MXU (default caps)
        (x, mask, dict(hard_pooling=False, mask_threshold=0.5), 2e-2, 2e-2),
        # ragged case B: C and HW padding paths, f32 MXU for tight check
        (x2, mask2, dict(hard_pooling=True, mask_threshold=0.5,
                         mxu_dtype=jnp.float32, thw_cap=128, tc_cap=512), 1e-5, 1e-5),
    ]

    for xi, mi, cfg, atol, rtol in cases:
        out = mask_pooling(xi, mi, **cfg)
        pooled = jax.block_until_ready(out["mask_pooled_features"])
        ref = _reference(xi, mi, hard_pooling=cfg["hard_pooling"],
                         mask_threshold=cfg["mask_threshold"])
        assert pooled.shape == ref.shape, (pooled.shape, ref.shape)
        assert jnp.allclose(pooled, ref, atol=atol, rtol=rtol), f"mismatch vs reference: {cfg}"

    print("KERNEL_OK")
</pallas_src>

<mosaic_0001>
module attributes {stable_mosaic.version = 11 : i64} {
  func.func @_mask_pool_kernel(%arg0: i32, %arg1: i32, %arg2: i32, %arg3: memref<1x32x256xf32, #tpu.memory_space<vmem>>, %arg4: memref<1x256x8xf32, #tpu.memory_space<vmem>>, %arg5: memref<1x32x8xf32, #tpu.memory_space<vmem>>, %arg6: memref<32x8xf32, #tpu.memory_space<vmem>>, %arg7: memref<1x8xf32, #tpu.memory_space<vmem>>) attributes {dimension_semantics = [#tpu.dimension_semantics<parallel>, #tpu.dimension_semantics<parallel>, #tpu.dimension_semantics<arbitrary>], iteration_bounds = array<i64: 2, 1, 1>, scalar_prefetch = 0 : i64, scratch_operands = 2 : i64, tpu.core_type = #tpu.core_type<tc>, window_params = [{transform_indices = @transform_0, window_bounds = array<i64: 1, 32, 256>}, {transform_indices = @transform_1, window_bounds = array<i64: 1, 256, 8>}, {transform_indices = @transform_2, window_bounds = array<i64: 1, 32, 8>}]} {
    %c0_i32 = arith.constant 0 : i32
    %0 = arith.cmpi eq, %arg2, %c0_i32 : i32
    %1 = arith.extui %0 : i1 to i32
    %c0_i32_0 = arith.constant 0 : i32
    %2 = arith.cmpi ne, %1, %c0_i32_0 : i32
    scf.if %2 {
      %cst_17 = arith.constant 0.000000e+00 : f32
      %29 = vector.broadcast %cst_17 : f32 to vector<32x8xf32>
      %c0_18 = arith.constant 0 : index
      %c0_19 = arith.constant 0 : index
      %30 = vector.load %arg6[%c0_18, %c0_19] : memref<32x8xf32, #tpu.memory_space<vmem>>, vector<32x8xf32>
      tpu.vector_store %arg6[%c0_18, %c0_19], %29 {strides = array<i32>} : memref<32x8xf32, #tpu.memory_space<vmem>>, vector<32x8xf32>,
      %cst_20 = arith.constant 0.000000e+00 : f32
      %31 = vector.broadcast %cst_20 : f32 to vector<1x8xf32>
      %c0_21 = arith.constant 0 : index
      %c0_22 = arith.constant 0 : index
      %32 = vector.load %arg7[%c0_21, %c0_22] : memref<1x8xf32, #tpu.memory_space<vmem>>, vector<1x8xf32>
      tpu.vector_store %arg7[%c0_21, %c0_22], %31 {strides = array<i32>} : memref<1x8xf32, #tpu.memory_space<vmem>>, vector<1x8xf32>,
    } else {
    }
    %c0 = arith.constant 0 : index
    %c0_1 = arith.constant 0 : index
    %c0_2 = arith.constant 0 : index
    %3 = vector.load %arg3[%c0, %c0_1, %c0_2] : memref<1x32x256xf32, #tpu.memory_space<vmem>>, vector<1x32x256xf32>
    %4 = vector.shape_cast %3 : vector<1x32x256xf32> to vector<32x256xf32>
    %5 = arith.truncf %4 : vector<32x256xf32> to vector<32x256xbf16>
    %c256_i32 = arith.constant 256 : i32
    %6 = arith.muli %arg2, %c256_i32 : i32
    %7 = tpu.assume_multiple %6, 256 : i32
    %c0_3 = arith.constant 0 : index
    %8 = arith.index_cast %7 : i32 to index
    %c0_4 = arith.constant 0 : index
    %9 = vector.load %arg4[%c0_3, %8, %c0_4] : memref<1x256x8xf32, #tpu.memory_space<vmem>>, vector<1x256x8xf32>
    %10 = vector.shape_cast %9 : vector<1x256x8xf32> to vector<256x8xf32>
    %cst = arith.constant 0.000000e+00 : f32
    %11 = vector.broadcast %cst : f32 to vector<256x8xf32>
    %12 = arith.cmpf ogt, %10, %11 : vector<256x8xf32>
    %13 = arith.extui %12 : vector<256x8xi1> to vector<256x8xi32>
    %14 = arith.sitofp %13 : vector<256x8xi32> to vector<256x8xf32>
    %15 = arith.truncf %14 : vector<256x8xf32> to vector<256x8xbf16>
    %c0_5 = arith.constant 0 : index
    %c0_6 = arith.constant 0 : index
    %16 = vector.load %arg7[%c0_5, %c0_6] : memref<1x8xf32, #tpu.memory_space<vmem>>, vector<1x8xf32>
    %17 = arith.extf %15 : vector<256x8xbf16> to vector<256x8xf32>
    %cst_7 = arith.constant dense<0.000000e+00> : vector<8xf32>
    %18 = vector.multi_reduction <add>, %17, %cst_7 [0] : vector<256x8xf32> to vector<8xf32>
    %19 = vector.shape_cast %18 : vector<8xf32> to vector<1x8xf32>
    %20 = arith.addf %16, %19 : vector<1x8xf32>
    %c0_8 = arith.constant 0 : index
    %c0_9 = arith.constant 0 : index
    %21 = vector.load %arg7[%c0_8, %c0_9] : memref<1x8xf32, #tpu.memory_space<vmem>>, vector<1x8xf32>
    tpu.vector_store %arg7[%c0_8, %c0_9], %20 {strides = array<i32>} : memref<1x8xf32, #tpu.memory_space<vmem>>, vector<1x8xf32>,
    %c0_10 = arith.constant 0 : index
    %c0_11 = arith.constant 0 : index
    %22 = vector.load %arg6[%c0_10, %c0_11] : memref<32x8xf32, #tpu.memory_space<vmem>>, vector<32x8xf32>
    %cst_12 = arith.constant dense<0.000000e+00> : vector<32x8xf32>
    %23 = tpu.matmul %5, %15, %cst_12 {dimension_numbers = #tpu.dot_dimension_numbers<[1], [0], [0], [1], [0, 0, 1, 1], [], []>} : vector<32x256xbf16>, vector<256x8xbf16>, vector<32x8xf32> -> vector<32x8xf32>
    %24 = arith.addf %22, %23 : vector<32x8xf32>
    %c0_13 = arith.constant 0 : index
    %c0_14 = arith.constant 0 : index
    %25 = vector.load %arg6[%c0_13, %c0_14] : memref<32x8xf32, #tpu.memory_space<vmem>>, vector<32x8xf32>
    tpu.vector_store %arg6[%c0_13, %c0_14], %24 {strides = array<i32>} : memref<32x8xf32, #tpu.memory_space<vmem>>, vector<32x8xf32>,
    %c0_i32_15 = arith.constant 0 : i32
    %26 = arith.cmpi eq, %arg2, %c0_i32_15 : i32
    %27 = arith.extui %26 : i1 to i32
    %c0_i32_16 = arith.constant 0 : i32
    %28 = arith.cmpi ne, %27, %c0_i32_16 : i32
    scf.if %28 {
      %c0_17 = arith.constant 0 : index
      %c0_18 = arith.constant 0 : index
      %29 = vector.load %arg7[%c0_17, %c0_18] : memref<1x8xf32, #tpu.memory_space<vmem>>, vector<1x8xf32>
      %cst_19 = arith.constant 9.99999993E-9 : f32
      %30 = vector.broadcast %cst_19 : f32 to vector<1x8xf32>
      %31 = arith.addf %29, %30 : vector<1x8xf32>
      %32 = tpu.reciprocal %31 : vector<1x8xf32> -> vector<1x8xf32>
      %c0_20 = arith.constant 0 : index
      %c0_21 = arith.constant 0 : index
      %33 = vector.load %arg6[%c0_20, %c0_21] : memref<32x8xf32, #tpu.memory_space<vmem>>, vector<32x8xf32>
      %34 = vector.broadcast %32 : vector<1x8xf32> to vector<32x8xf32>
      %35 = arith.mulf %33, %34 : vector<32x8xf32>
      %c0_22 = arith.constant 0 : index
      %c0_23 = arith.constant 0 : index
      %c0_24 = arith.constant 0 : index
      %36 = vector.load %arg5[%c0_22, %c0_23, %c0_24] : memref<1x32x8xf32, #tpu.memory_space<vmem>>, vector<1x32x8xf32>
      %37 = vector.shape_cast %36 : vector<1x32x8xf32> to vector<32x8xf32>
      %38 = vector.shape_cast %35 : vector<32x8xf32> to vector<1x32x8xf32>
      tpu.vector_store %arg5[%c0_22, %c0_23, %c0_24], %38 {strides = array<i32>} : memref<1x32x8xf32, #tpu.memory_space<vmem>>, vector<1x32x8xf32>,
    } else {
    }
    return
  }
  func.func @transform_0(%arg0: i32, %arg1: i32, %arg2: i32) -> (i32, i32, i32) {
    %c0_i32 = arith.constant 0 : i32
    return %arg0, %arg1, %arg2 : i32, i32, i32
  }
  func.func @transform_1(%arg0: i32, %arg1: i32, %arg2: i32) -> (i32, i32, i32) {
    %c0_i32 = arith.constant 0 : i32
    %c0_i32_0 = arith.constant 0 : i32
    %c0_i32_1 = arith.constant 0 : i32
    return %arg0, %c0_i32, %c0_i32_0 : i32, i32, i32
  }
  func.func @transform_2(%arg0: i32, %arg1: i32, %arg2: i32) -> (i32, i32, i32) {
    %c0_i32 = arith.constant 0 : i32
    %c0_i32_0 = arith.constant 0 : i32
    return %arg0, %arg1, %c0_i32 : i32, i32, i32
  }
}

</mosaic_0001>

<llo_original>
// kernel: tpu_custom_call.1
$region0: #{tpu_custom_call.1}
  #allocation0 [shape = 'u32[]', space=smem, size = 0x4, offset = 0x4, fixed_abs, tag = 'smem constant byte address 0x4 - core index']
  #allocation1 [shape = 'u32[144,128]{1,0:T(1,128)}', space=vmem, size = 0x12000, scoped, tag = 'internal scratch']
  #allocation2 [shape = 'f32[32,8]{1,0:T(8,128)}', space=vmem, size = 0x4000, scoped, tag = 'scratch operand']
  #allocation3 [shape = 'f32[1,8]{1,0:T(1,128)}', space=vmem, size = 0x200, scoped, tag = 'scratch operand']
  %s0 = inlined_call_operand.vmem [shape: f32[2,32,256], index: 0, kind: input, shape index: {}]
  %s1 = inlined_call_operand.vmem [shape: f32[2,256,8], index: 1, kind: input, shape index: {}]
  %s2 = inlined_call_operand.vmem [shape: f32[2,32,8], index: 2, kind: output, shape index: {}]
  %s3 = sld [smem:[#allocation0]]
  $region49: #{tpu_custom_call.1} parent=0
    _
  %s5 = ssub.s32 1, %s3
  %s6 = scalar_select 0, %s5, %s3
  loop: start=0, step=1, limit=4
  $region2: #{tpu_custom_call.1} parent=0 // loop_pre_header
    _
  $region3: #{tpu_custom_call.1} parent=0 // loop_header
    %s8 = sphi 0, %s12
    %p9 = scmp.ge.s32.totalorder %s8, 4
    %s15 = sphi 0, %s34
    %s16 = sphi 0, %s30
    %s17 = sphi 0, %s26
    %s18 = sphi 0, %s15
    %s19 = sphi 0, %s16
    %s20 = sphi 0, %s17
    %s21 = sphi 0, %s18
    %s22 = sphi 0, %s19
    %s23 = sphi 0, %s20
    %s41 = sphi 0, %s43
    %s44 = sphi 0, %s41
    %s45 = sphi 0, %s44
    %s61 = sphi 0, %s45
    %s67 = sphi 0, %s69
    %s70 = sphi 0, %s67
    %s71 = sphi 0, %s70
    %s87 = sphi 0, %s71
    %s95 = sphi 0, %s97
    %s98 = sphi 0, %s95
    %s99 = sphi 0, %s98
    %s115 = sphi 0, %s99
  $region4: #{tpu_custom_call.1} parent=0 // loop_header_branch
    %11 = sbr.rel (%p9) target = $region8
  $region5: #{tpu_custom_call.1} parent=0 // loop_body
    %s13 = ssub.s32 %s8, 1
    %s14 = ssub.s32 %s8, 2
    %s24 = sadd.s32 1, %s17
    %p25 = scmp.ge.s32.totalorder %s24, 1
    %s26 = scalar_select %p25, 0, %s24
    %s27 = sadd.s32 1, %s16
    %s28 = scalar_select %p25, %s27, %s16
    %p29 = scmp.ge.s32.totalorder %s28, 1
    %s30 = scalar_select %p29, 0, %s28
    %s31 = sadd.s32 1, %s15
    %s32 = scalar_select %p29, %s31, %s15
    %p33 = scmp.ge.s32.totalorder %s32, 2
    %s34 = scalar_select %p33, 0, %s32
    %s35 = ssub.s32 %s15, %s34
    %s36 = ssub.s32 %s16, %s30
    %s37 = sor.u32 %s35, %s36
    %s38 = ssub.s32 %s17, %s26
    %s39 = sor.u32 %s37, %s38
    %p40 = scmp.eq.s32.totalorder %s39, 0
    %s42 = sadd.s32 %s41, 1
    %s43 = scalar_select %p40, %s41, %s42
    %p46 = pneg %p40
    %p47 = scmp.eq.s32.totalorder %s8, 1
    %p48 = por %p46, %p47
    %p49 = scmp.ne.s32.totalorder %s41, %s44
    %p50 = scmp.eq.s32.totalorder %s8, 0
    %p51 = por %p49, %p50
    %p52 = scmp.ne.s32.totalorder %s41, %s44
    %p53 = scmp.eq.s32.totalorder %s13, 1
    %p54 = por %p52, %p53
    %p55 = scmp.ne.s32.totalorder %s44, %s45
    %p56 = scmp.eq.s32.totalorder %s13, 0
    %p57 = por %p55, %p56
    %p58 = scmp.ne.s32.totalorder %s44, %s45
    %p59 = scmp.eq.s32.totalorder %s14, 1
    %p60 = por %p58, %p59
    %p62 = scmp.ne.s32.totalorder %s45, %s61
    %p63 = scmp.eq.s32.totalorder %s14, 0
    %p64 = por %p62, %p63
    %s65 = ssub.s32 %s15, %s34
    %p66 = scmp.eq.s32.totalorder %s65, 0
    %s68 = sadd.s32 %s67, 1
    %s69 = scalar_select %p66, %s67, %s68
    %p72 = pneg %p66
    %p73 = scmp.eq.s32.totalorder %s8, 1
    %p74 = por %p72, %p73
    %p75 = scmp.ne.s32.totalorder %s67, %s70
    %p76 = scmp.eq.s32.totalorder %s8, 0
    %p77 = por %p75, %p76
    %p78 = scmp.ne.s32.totalorder %s67, %s70
    %p79 = scmp.eq.s32.totalorder %s13, 1
    %p80 = por %p78, %p79
    %p81 = scmp.ne.s32.totalorder %s70, %s71
    %p82 = scmp.eq.s32.totalorder %s13, 0
    %p83 = por %p81, %p82
    %p84 = scmp.ne.s32.totalorder %s70, %s71
    %p85 = scmp.eq.s32.totalorder %s14, 1
    %p86 = por %p84, %p85
    %p88 = scmp.ne.s32.totalorder %s71, %s87
    %p89 = scmp.eq.s32.totalorder %s14, 0
    %p90 = por %p88, %p89
    %s91 = ssub.s32 %s15, %s34
    %s92 = ssub.s32 %s16, %s30
    %s93 = sor.u32 %s91, %s92
    %p94 = scmp.eq.s32.totalorder %s93, 0
    %s96 = sadd.s32 %s95, 1
    %s97 = scalar_select %p94, %s95, %s96
    %p100 = pneg %p94
    %p101 = scmp.eq.s32.totalorder %s8, 1
    %p102 = por %p100, %p101
    %p103 = scmp.ne.s32.totalorder %s95, %s98
    %p104 = scmp.eq.s32.totalorder %s8, 0
    %p105 = por %p103, %p104
    %p106 = scmp.ne.s32.totalorder %s95, %s98
    %p107 = scmp.eq.s32.totalorder %s13, 1
    %p108 = por %p106, %p107
    %p109 = scmp.ne.s32.totalorder %s98, %s99
    %p110 = scmp.eq.s32.totalorder %s13, 0
    %p111 = por %p109, %p110
    %p112 = scmp.ne.s32.totalorder %s98, %s99
    %p113 = scmp.eq.s32.totalorder %s14, 1
    %p114 = por %p112, %p113
    %p116 = scmp.ne.s32.totalorder %s99, %s115
    %p117 = scmp.eq.s32.totalorder %s14, 0
    %p118 = por %p116, %p117
    %p119 = scmp.le.s32.totalorder 1, %s8
    %p120 = scmp.lt.s32.totalorder %s8, 3
    %p121 = pnand %p119, %p120
    %p122 = pneg %p121
    // Predicated region
    $region9: #{tpu_custom_call.1} parent=5 // pred_check
      _
    $region10: #{tpu_custom_call.1} parent=5 // pred_check_branch
      %124 = sbr.rel (%p121) target = $region12
    $region11: #{tpu_custom_call.1} parent=5 // pred_region
      %s125 = ssub.s32 %s8, 1
    $region12: #{tpu_custom_call.1} parent=5 // pred_fallthru
      _
    %p126 = scmp.lt.s32.totalorder %s8, 2
    // Predicated region
    $region13: #{tpu_custom_call.1} parent=5 // pred_check
      %p127 = pneg %p126
    $region14: #{tpu_custom_call.1} parent=5 // pred_check_branch
      %129 = sbr.rel (%p127) target = $region16
    $region15: #{tpu_custom_call.1} parent=5 // pred_region
      // Predicated region
      $region17: #{tpu_custom_call.1} parent=15 // pred_check
        %p130 = pneg %p51
      $region18: #{tpu_custom_call.1} parent=15 // pred_check_branch
        %132 = sbr.rel (%p130) target = $region20
      $region19: #{tpu_custom_call.1} parent=15 // pred_region
        %s133 = smul.u32 4, %s16
        %s134 = smul.u32 2, %s17
        %p135 = scmp.lt.s32.totalorder %s15, 1
        %s136 = scalar_select %p135, %s15, 1
        %p137 = scmp.lt.s32.totalorder %s133, 3
        %s138 = scalar_select %p137, %s133, 3
        %p139 = scmp.lt.s32.totalorder %s134, 1
        %s140 = scalar_select %p139, %s134, 1
        %s141 = smul.addr %s138, 2
        %s142 = sadd.s32 %s140, %s141
        %s143 = smul.addr %s136, 8
        %s144 = sadd.s32 %s142, %s143
        %s145 = smul.addr %s144, 8
        %s146 = scalar_lea.vmem %s0, %s145
        %s147 = smul.u32 4, %s16
        %s148 = smul.u32 2, %s17
      $region20: #{tpu_custom_call.1} parent=15 // pred_fallthru
        _
      // Predicated region
      $region21: #{tpu_custom_call.1} parent=15 // pred_check
        %p149 = pneg %p77
      $region22: #{tpu_custom_call.1} parent=15 // pred_check_branch
        %151 = sbr.rel (%p149) target = $region24
      $region23: #{tpu_custom_call.1} parent=15 // pred_region
        %p152 = scmp.lt.s32.totalorder %s15, 1
        %s153 = scalar_select %p152, %s15, 1
        %s154 = smul.addr %s153, 32
        %s155 = smul.addr %s154, 8
        %s156 = scalar_lea.vmem %s1, %s155
      $region24: #{tpu_custom_call.1} parent=15 // pred_fallthru
        _
    $region16: #{tpu_custom_call.1} parent=5 // pred_fallthru
      _
    %p157 = scmp.le.s32.totalorder 1, %s8
    %p158 = scmp.lt.s32.totalorder %s8, 3
    %p159 = pnand %p157, %p158
    %p160 = pneg %p159
    // Predicated region
    $region25: #{tpu_custom_call.1} parent=5 // pred_check
      _
    $region26: #{tpu_custom_call.1} parent=5 // pred_check_branch
      %162 = sbr.rel (%p159) target = $region28
    $region27: #{tpu_custom_call.1} parent=5 // pred_region
      %s163 = ssub.s32 %s8, 1
      %s164 = smul.u32 4, %s19
      %s165 = smul.u32 2, %s20
      %p166 = scmp.lt.s32.totalorder %s18, 1
      %s167 = scalar_select %p166, %s18, 1
      %p168 = scmp.lt.s32.totalorder %s164, 3
      %s169 = scalar_select %p168, %s164, 3
      %p170 = scmp.lt.s32.totalorder %s165, 1
      %s171 = scalar_select %p170, %s165, 1
      %s172 = smul.addr %s169, 2
      %s173 = sadd.s32 %s171, %s172
      %s174 = smul.addr %s167, 8
      %s175 = sadd.s32 %s173, %s174
      %s176 = smul.addr %s175, 8
      %s177 = scalar_lea.vmem %s0, %s176
      %p178 = pneg %p57
      %p179 = pneg %p54
      %p180 = scmp.lt.s32.totalorder %s18, 1
      %s181 = scalar_select %p180, %s18, 1
      %s182 = smul.addr %s181, 32
      %s183 = smul.addr %s182, 8
      %s184 = scalar_lea.vmem %s1, %s183
      %p185 = pneg %p83
      %p186 = pneg %p80
      %p187 = pneg %p111
      %p188 = pneg %p108
      %s189 = smul.u32 4, %s19
      %p190 = scmp.lt.s32.totalorder %s18, 1
      %s191 = scalar_select %p190, %s18, 1
      %p192 = scmp.lt.s32.totalorder %s189, 3
      %s193 = scalar_select %p192, %s189, 3
      %s194 = smul.addr %s191, 4
      %s195 = sadd.s32 %s193, %s194
      %s196 = smul.addr %s195, 8
      %s197 = scalar_lea.vmem %s2, %s196
      %s198 = smul.u32 4, %s19
      %s199 = smul.u32 2, %s20
      %p200 = scmp.lt.s32.totalorder %s18, 1
      %s201 = scalar_select %p200, %s18, 1
      %p202 = scmp.lt.s32.totalorder %s198, 3
      %s203 = scalar_select %p202, %s198, 3
      %p204 = scmp.lt.s32.totalorder %s199, 1
      %s205 = scalar_select %p204, %s199, 1
      %s206 = smul.addr %s203, 2
      %s207 = sadd.s32 %s205, %s206
      %s208 = smul.addr %s201, 8
      %s209 = sadd.s32 %s207, %s208
      %s210 = smul.addr %s209, 8
      %s211 = scalar_lea.vmem %s0, %s210
      %s212 = smul.u32 4, %s19
      %s213 = smul.u32 2, %s20
      %p214 = scmp.lt.s32.totalorder %s18, 1
      %s215 = scalar_select %p214, %s18, 1
      %s216 = smul.addr %s215, 32
      %s217 = smul.addr %s216, 8
      %s218 = scalar_lea.vmem %s1, %s217
      %s219 = smul.u32 4, %s19
      %p220 = scmp.lt.s32.totalorder %s18, 1
      %s221 = scalar_select %p220, %s18, 1
      %p222 = scmp.lt.s32.totalorder %s219, 3
      %s223 = scalar_select %p222, %s219, 3
      %s224 = smul.addr %s221, 4
      %s225 = sadd.s32 %s223, %s224
      %s226 = smul.addr %s225, 8
      %s227 = scalar_lea.vmem %s2, %s226
      %s228 = smul.u32 4, %s19
      %p230 = scmp.eq.s32.totalorder %s20, 0
      // Predicated region
      $region29: #{tpu_custom_call.1} parent=27 // pred_check
        %p231 = pneg %p230
      $region30: #{tpu_custom_call.1} parent=27 // pred_check_branch
        %233 = sbr.rel (%p231) target = $region32
      $region31: #{tpu_custom_call.1} parent=27 // pred_region
        %vm234 = vcmask 64512
        %235 = vst.msk [vmem:[#allocation2] sm:$0xff] %vm234, 0.0
        %236 = vst.msk [vmem:[#allocation2 + $0x8] sm:$0xff] %vm234, 0.0
        %237 = vst.msk [vmem:[#allocation2 + $0x10] sm:$0xff] %vm234, 0.0
        %238 = vst.msk [vmem:[#allocation2 + $0x18] sm:$0xff] %vm234, 0.0
        %vm239 = vcmask 57344
        %240 = vst.msk [vmem:[#allocation3] sm:$0x1] %vm239, 0.0
      $region32: #{tpu_custom_call.1} parent=27 // pred_fallthru
        _
      %v241 = vld [vmem:[%s211] sm:$0xff]
      %v242 = vld [vmem:[%s211 + $0x8] sm:$0xff]
      %v243 = vld [vmem:[%s211 + $0x10] sm:$0xff]
      %v244 = vld [vmem:[%s211 + $0x18] sm:$0xff]
      %v245 = vld [vmem:[%s211 + $0x20] sm:$0xff]
      %v246 = vld [vmem:[%s211 + $0x28] sm:$0xff]
      %v247 = vld [vmem:[%s211 + $0x30] sm:$0xff]
      %v248 = vld [vmem:[%s211 + $0x38] sm:$0xff]
      %v249 = vpack.c.bf16 %v243, %v241
      %v250 = vpack.c.bf16 %v244, %v242
      %v251 = vpack.c.bf16 %v247, %v245
      %v252 = vpack.c.bf16 %v248, %v246
      %s253 = smul.u32 %s20, 256
      %s254 = scalar_lea.vmem %s218, %s253
      %v255 = vld [vmem:[%s254] sm:$0xff]
      %v256 = vld [vmem:[%s254 + $0x8] sm:$0xff]
      %v257 = vld [vmem:[%s254 + $0x10] sm:$0xff]
      %v258 = vld [vmem:[%s254 + $0x18] sm:$0xff]
      %v259 = vld [vmem:[%s254 + $0x20] sm:$0xff]
      %v260 = vld [vmem:[%s254 + $0x28] sm:$0xff]
      %v261 = vld [vmem:[%s254 + $0x30] sm:$0xff]
      %v262 = vld [vmem:[%s254 + $0x38] sm:$0xff]
      %v263 = vld [vmem:[%s254 + $0x40] sm:$0xff]
      %v264 = vld [vmem:[%s254 + $0x48] sm:$0xff]
      %v265 = vld [vmem:[%s254 + $0x50] sm:$0xff]
      %v266 = vld [vmem:[%s254 + $0x58] sm:$0xff]
      %v267 = vld [vmem:[%s254 + $0x60] sm:$0xff]
      %v268 = vld [vmem:[%s254 + $0x68] sm:$0xff]
      %v269 = vld [vmem:[%s254 + $0x70] sm:$0xff]
      %v270 = vld [vmem:[%s254 + $0x78] sm:$0xff]
      %v271 = vld [vmem:[%s254 + $0x80] sm:$0xff]
      %v272 = vld [vmem:[%s254 + $0x88] sm:$0xff]
      %v273 = vld [vmem:[%s254 + $0x90] sm:$0xff]
      %v274 = vld [vmem:[%s254 + $0x98] sm:$0xff]
      %v275 = vld [vmem:[%s254 + $0xa0] sm:$0xff]
      %v276 = vld [vmem:[%s254 + $0xa8] sm:$0xff]
      %v277 = vld [vmem:[%s254 + $0xb0] sm:$0xff]
      %v278 = vld [vmem:[%s254 + $0xb8] sm:$0xff]
      %v279 = vld [vmem:[%s254 + $0xc0] sm:$0xff]
      %v280 = vld [vmem:[%s254 + $0xc8] sm:$0xff]
      %v281 = vld [vmem:[%s254 + $0xd0] sm:$0xff]
      %v282 = vld [vmem:[%s254 + $0xd8] sm:$0xff]
      %v283 = vld [vmem:[%s254 + $0xe0] sm:$0xff]
      %v284 = vld [vmem:[%s254 + $0xe8] sm:$0xff]
      %v285 = vld [vmem:[%s254 + $0xf0] sm:$0xff]
      %v286 = vld [vmem:[%s254 + $0xf8] sm:$0xff]
      %vm287 = vcmp.gt.f32.partialorder %v255, 0.0
      %vm288 = vcmp.gt.f32.partialorder %v256, 0.0
      %vm289 = vcmp.gt.f32.partialorder %v257, 0.0
      %vm290 = vcmp.gt.f32.partialorder %v258, 0.0
      %vm291 = vcmp.gt.f32.partialorder %v259, 0.0
      %vm292 = vcmp.gt.f32.partialorder %v260, 0.0
      %vm293 = vcmp.gt.f32.partialorder %v261, 0.0
      %vm294 = vcmp.gt.f32.partialorder %v262, 0.0
      %vm295 = vcmp.gt.f32.partialorder %v263, 0.0
      %vm296 = vcmp.gt.f32.partialorder %v264, 0.0
      %vm297 = vcmp.gt.f32.partialorder %v265, 0.0
      %vm298 = vcmp.gt.f32.partialorder %v266, 0.0
      %vm299 = vcmp.gt.f32.partialorder %v267, 0.0
      %vm300 = vcmp.gt.f32.partialorder %v268, 0.0
      %vm301 = vcmp.gt.f32.partialorder %v269, 0.0
      %vm302 = vcmp.gt.f32.partialorder %v270, 0.0
      %vm303 = vcmp.gt.f32.partialorder %v271, 0.0
      %vm304 = vcmp.gt.f32.partialorder %v272, 0.0
      %vm305 = vcmp.gt.f32.partialorder %v273, 0.0
      %vm306 = vcmp.gt.f32.partialorder %v274, 0.0
      %vm307 = vcmp.gt.f32.partialorder %v275, 0.0
      %vm308 = vcmp.gt.f32.partialorder %v276, 0.0
      %vm309 = vcmp.gt.f32.partialorder %v277, 0.0
      %vm310 = vcmp.gt.f32.partialorder %v278, 0.0
      %vm311 = vcmp.gt.f32.partialorder %v279, 0.0
      %vm312 = vcmp.gt.f32.partialorder %v280, 0.0
      %vm313 = vcmp.gt.f32.partialorder %v281, 0.0
      %vm314 = vcmp.gt.f32.partialorder %v282, 0.0
      %vm315 = vcmp.gt.f32.partialorder %v283, 0.0
      %vm316 = vcmp.gt.f32.partialorder %v284, 0.0
      %vm317 = vcmp.gt.f32.partialorder %v285, 0.0
      %vm318 = vcmp.gt.f32.partialorder %v286, 0.0
      %v319 = vsel %vm287, 1, 0
      %v320 = vsel %vm288, 1, 0
      %v321 = vsel %vm289, 1, 0
      %v322 = vsel %vm290, 1, 0
      %v323 = vsel %vm291, 1, 0
      %v324 = vsel %vm292, 1, 0
      %v325 = vsel %vm293, 1, 0
      %v326 = vsel %vm294, 1, 0
      %v327 = vsel %vm295, 1, 0
      %v328 = vsel %vm296, 1, 0
      %v329 = vsel %vm297, 1, 0
      %v330 = vsel %vm298, 1, 0
      %v331 = vsel %vm299, 1, 0
      %v332 = vsel %vm300, 1, 0
      %v333 = vsel %vm301, 1, 0
      %v334 = vsel %vm302, 1, 0
      %v335 = vsel %vm303, 1, 0
      %v336 = vsel %vm304, 1, 0
      %v337 = vsel %vm305, 1, 0
      %v338 = vsel %vm306, 1, 0
      %v339 = vsel %vm307, 1, 0
      %v340 = vsel %vm308, 1, 0
      %v341 = vsel %vm309, 1, 0
      %v342 = vsel %vm310, 1, 0
      %v343 = vsel %vm311, 1, 0
      %v344 = vsel %vm312, 1, 0
      %v345 = vsel %vm313, 1, 0
      %v346 = vsel %vm314, 1, 0
      %v347 = vsel %vm315, 1, 0
      %v348 = vsel %vm316, 1, 0
      %v349 = vsel %vm317, 1, 0
      %v350 = vsel %vm318, 1, 0
      %v351 = vcvt.s32.f32 %v319
      %v352 = vcvt.s32.f32 %v320
      %v353 = vcvt.s32.f32 %v321
      %v354 = vcvt.s32.f32 %v322
      %v355 = vcvt.s32.f32 %v323
      %v356 = vcvt.s32.f32 %v324
      %v357 = vcvt.s32.f32 %v325
      %v358 = vcvt.s32.f32 %v326
      %v359 = vcvt.s32.f32 %v327
      %v360 = vcvt.s32.f32 %v328
      %v361 = vcvt.s32.f32 %v329
      %v362 = vcvt.s32.f32 %v330
      %v363 = vcvt.s32.f32 %v331
      %v364 = vcvt.s32.f32 %v332
      %v365 = vcvt.s32.f32 %v333
      %v366 = vcvt.s32.f32 %v334
      %v367 = vcvt.s32.f32 %v335
      %v368 = vcvt.s32.f32 %v336
      %v369 = vcvt.s32.f32 %v337
      %v370 = vcvt.s32.f32 %v338
      %v371 = vcvt.s32.f32 %v339
      %v372 = vcvt.s32.f32 %v340
      %v373 = vcvt.s32.f32 %v341
      %v374 = vcvt.s32.f32 %v342
      %v375 = vcvt.s32.f32 %v343
      %v376 = vcvt.s32.f32 %v344
      %v377 = vcvt.s32.f32 %v345
      %v378 = vcvt.s32.f32 %v346
      %v379 = vcvt.s32.f32 %v347
      %v380 = vcvt.s32.f32 %v348
      %v381 = vcvt.s32.f32 %v349
      %v382 = vcvt.s32.f32 %v350
      %v383 = vpack.c.bf16 %v352, %v351
      %v384 = vpack.c.bf16 %v354, %v353
      %v385 = vpack.c.bf16 %v356, %v355
      %v386 = vpack.c.bf16 %v358, %v357
      %v387 = vpack.c.bf16 %v360, %v359
      %v388 = vpack.c.bf16 %v362, %v361
      %v389 = vpack.c.bf16 %v364, %v363
      %v390 = vpack.c.bf16 %v366, %v365
      %v391 = vpack.c.bf16 %v368, %v367
      %v392 = vpack.c.bf16 %v370, %v369
      %v393 = vpack.c.bf16 %v372, %v371
      %v394 = vpack.c.bf16 %v374, %v373
      %v395 = vpack.c.bf16 %v376, %v375
      %v396 = vpack.c.bf16 %v378, %v377
      %v397 = vpack.c.bf16 %v380, %v379
      %v398 = vpack.c.bf16 %v382, %v381
      %v399 = vld [vmem:[#allocation3] sm:$0x1]
      %v400 = vunpack.c.l.bf16 %v383
      %v401 = vunpack.c.h.bf16 %v383
      %v402 = vunpack.c.l.bf16 %v384
      %v403 = vunpack.c.h.bf16 %v384
      %v404 = vunpack.c.l.bf16 %v385
      %v405 = vunpack.c.h.bf16 %v385
      %v406 = vunpack.c.l.bf16 %v386
      %v407 = vunpack.c.h.bf16 %v386
      %v408 = vunpack.c.l.bf16 %v387
      %v409 = vunpack.c.h.bf16 %v387
      %v410 = vunpack.c.l.bf16 %v388
      %v411 = vunpack.c.h.bf16 %v388
      %v412 = vunpack.c.l.bf16 %v389
      %v413 = vunpack.c.h.bf16 %v389
      %v414 = vunpack.c.l.bf16 %v390
      %v415 = vunpack.c.h.bf16 %v390
      %v416 = vunpack.c.l.bf16 %v391
      %v417 = vunpack.c.h.bf16 %v391
      %v418 = vunpack.c.l.bf16 %v392
      %v419 = vunpack.c.h.bf16 %v392
      %v420 = vunpack.c.l.bf16 %v393
      %v421 = vunpack.c.h.bf16 %v393
      %v422 = vunpack.c.l.bf16 %v394
      %v423 = vunpack.c.h.bf16 %v394
      %v424 = vunpack.c.l.bf16 %v395
      %v425 = vunpack.c.h.bf16 %v395
      %v426 = vunpack.c.l.bf16 %v396
      %v427 = vunpack.c.h.bf16 %v396
      %v428 = vunpack.c.l.bf16 %v397
      %v429 = vunpack.c.h.bf16 %v397
      %v430 = vunpack.c.l.bf16 %v398
      %v431 = vunpack.c.h.bf16 %v398
      %vm432 = vcmask 64512
      %v433 = vsel %vm432, %v400, 0.0
      %v434 = vsel %vm432, %v401, 0.0
      %v435 = vadd.f32 %v433, %v434
      %v436 = vsel %vm432, %v402, 0.0
      %v437 = vadd.f32 %v435, %v436
      %v438 = vsel %vm432, %v403, 0.0
      %v439 = vadd.f32 %v437, %v438
      %v440 = vsel %vm432, %v404, 0.0
      %v441 = vadd.f32 %v439, %v440
      %v442 = vsel %vm432, %v405, 0.0
      %v443 = vadd.f32 %v441, %v442
      %v444 = vsel %vm432, %v406, 0.0
      %v445 = vadd.f32 %v443, %v444
      %v446 = vsel %vm432, %v407, 0.0
      %v447 = vadd.f32 %v445, %v446
      %v448 = vsel %vm432, %v408, 0.0
      %v449 = vadd.f32 %v447, %v448
      %v450 = vsel %vm432, %v409, 0.0
      %v451 = vadd.f32 %v449, %v450
      %v452 = vsel %vm432, %v410, 0.0
      %v453 = vadd.f32 %v451, %v452
      %v454 = vsel %vm432, %v411, 0.0
      %v455 = vadd.f32 %v453, %v454
      %v456 = vsel %vm432, %v412, 0.0
      %v457 = vadd.f32 %v455, %v456
      %v458 = vsel %vm432, %v413, 0.0
      %v459 = vadd.f32 %v457, %v458
      %v460 = vsel %vm432, %v414, 0.0
      %v461 = vadd.f32 %v459, %v460
      %v462 = vsel %vm432, %v415, 0.0
      %v463 = vadd.f32 %v461, %v462
      %v464 = vsel %vm432, %v416, 0.0
      %v465 = vadd.f32 %v463, %v464
      %v466 = vsel %vm432, %v417, 0.0
      %v467 = vadd.f32 %v465, %v466
      %v468 = vsel %vm432, %v418, 0.0
      %v469 = vadd.f32 %v467, %v468
      %v470 = vsel %vm432, %v419, 0.0
      %v471 = vadd.f32 %v469, %v470
      %v472 = vsel %vm432, %v420, 0.0
      %v473 = vadd.f32 %v471, %v472
      %v474 = vsel %vm432, %v421, 0.0
      %v475 = vadd.f32 %v473, %v474
      %v476 = vsel %vm432, %v422, 0.0
      %v477 = vadd.f32 %v475, %v476
      %v478 = vsel %vm432, %v423, 0.0
      %v479 = vadd.f32 %v477, %v478
      %v480 = vsel %vm432, %v424, 0.0
      %v481 = vadd.f32 %v479, %v480
      %v482 = vsel %vm432, %v425, 0.0
      %v483 = vadd.f32 %v481, %v482
      %v484 = vsel %vm432, %v426, 0.0
      %v485 = vadd.f32 %v483, %v484
      %v486 = vsel %vm432, %v427, 0.0
      %v487 = vadd.f32 %v485, %v486
      %v488 = vsel %vm432, %v428, 0.0
      %v489 = vadd.f32 %v487, %v488
      %v490 = vsel %vm432, %v429, 0.0
      %v491 = vadd.f32 %v489, %v490
      %v492 = vsel %vm432, %v430, 0.0
      %v493 = vadd.f32 %v491, %v492
      %v494 = vsel %vm432, %v431, 0.0
      %v495 = vadd.f32 %v493, %v494
      %v496 = vrot.slane %v495, 4
      %v497 = vadd.f32 %v495, %v496
      %v498 = vrot.slane %v497, 2
      %v499 = vadd.f32 %v497, %v498
      %v500 = vrot.slane %v499, 1
      %v501 = vadd.f32 %v499, %v500
      %v502 = vadd.f32 %v399, %v501
      %vm503 = vcmask 57344
      %504 = vst.msk [vmem:[#allocation3] sm:$0x1] %vm503, %v502
      %v505 = vld [vmem:[#allocation2] sm:$0xff]
      %v506 = vld [vmem:[#allocation2 + $0x8] sm:$0xff]
      %v507 = vld [vmem:[#allocation2 + $0x10] sm:$0xff]
      %v508 = vld [vmem:[#allocation2 + $0x18] sm:$0xff]
      %509 = vmatprep.subr.bf16.mxu0 0
      %510 = vmatpush1.bf16.msra.mxu0 %v390
      %511 = vmatprep.subr.bf16.mxu0 0
      %512 = vmatpush1.bf16.msra.mxu0 %v389
      %513 = vmatprep.subr.bf16.mxu0 0
      %514 = vmatpush1.bf16.msra.mxu0 %v388
      %515 = vmatprep.subr.bf16.mxu0 0
      %516 = vmatpush1.bf16.msra.mxu0 %v387
      %517 = vmatprep.subr.bf16.mxu0 0
      %518 = vmatpush1.bf16.msra.mxu0 %v386
      %519 = vmatprep.subr.bf16.mxu0 0
      %520 = vmatpush1.bf16.msra.mxu0 %v385
      %521 = vmatprep.subr.bf16.mxu0 0
      %522 = vmatpush1.bf16.msra.mxu0 %v384
      %523 = vmatprep.subr.bf16.mxu0 0
      %524 = vmatpush1.bf16.msra.mxu0 %v383
      %525 = vmatprep.subr.bf16.mxu0 0
      %526 = vmatpush2.bf16.msra.mxu0 %v398
      %527 = vmatprep.subr.bf16.mxu0 0
      %528 = vmatpush2.bf16.msra.mxu0 %v397
      %529 = vmatprep.subr.bf16.mxu0 0
      %530 = vmatpush2.bf16.msra.mxu0 %v396
      %531 = vmatprep.subr.bf16.mxu0 0
      %532 = vmatpush2.bf16.msra.mxu0 %v395
      %533 = vmatprep.subr.bf16.mxu0 0
      %534 = vmatpush2.bf16.msra.mxu0 %v394
      %535 = vmatprep.subr.bf16.mxu0 0
      %536 = vmatpush2.bf16.msra.mxu0 %v393
      %537 = vmatprep.subr.bf16.mxu0 0
      %538 = vmatpush2.bf16.msra.mxu0 %v392
      %539 = vmatprep.subr.bf16.mxu0 0
      %540 = vmatpush2.bf16.msra.mxu0 %v391
      %541 = vmatprep.mubr.bf16.mxu0 %v250
      %542 = vmatmul.mubr.bf16.gmra.mxu0 %v249
      %v543 = vpop.f32.mrf.mxu0
      %v544 = vadd.f32 0.0, %v543
      %v545 = vpop.f32.mrf.mxu0
      %v546 = vpop.f32.mrf.mxu0
      %v547 = vadd.f32 0.0, %v546
      %v548 = vpop.f32.mrf.mxu0
      %549 = vmatprep.mubr.bf16.mxu0 %v252
      %550 = vmatmul.mubr.bf16.gmra.mxu0 %v251
      %v551 = vpop.f32.mrf.mxu0
      %v552 = vadd.f32 0.0, %v551
      %v553 = vpop.f32.mrf.mxu0
      %v554 = vpop.f32.mrf.mxu0
      %v555 = vadd.f32 0.0, %v554
      %v556 = vpop.f32.mrf.mxu0
      %557 = vdwg.mxu0
      %v558 = vadd.f32 %v505, %v544
      %v559 = vadd.f32 %v506, %v547
      %v560 = vadd.f32 %v507, %v552
      %v561 = vadd.f32 %v508, %v555
      %562 = vst.msk [vmem:[#allocation2] sm:$0xff] %vm432, %v558
      %563 = vst.msk [vmem:[#allocation2 + $0x8] sm:$0xff] %vm432, %v559
      %564 = vst.msk [vmem:[#allocation2 + $0x10] sm:$0xff] %vm432, %v560
      %565 = vst.msk [vmem:[#allocation2 + $0x18] sm:$0xff] %vm432, %v561
      // Predicated region
      $region33: #{tpu_custom_call.1} parent=27 // pred_check
        %p566 = pneg %p230
      $region34: #{tpu_custom_call.1} parent=27 // pred_check_branch
        %568 = sbr.rel (%p566) target = $region36
      $region35: #{tpu_custom_call.1} parent=27 // pred_region
        %v569 = vld [vmem:[#allocation3] sm:$0x1]
        %v570 = vadd.f32 %v569, 1e-08
        %v571 = vrcp.pop %v570
        %v572 = vld [vmem:[#allocation2] sm:$0xff]
        %v573 = vld [vmem:[#allocation2 + $0x8] sm:$0xff]
        %v574 = vld [vmem:[#allocation2 + $0x10] sm:$0xff]
        %v575 = vld [vmem:[#allocation2 + $0x18] sm:$0xff]
        %v577 = vlaneseq
        %v578 = vshrl.u32 %v577, 7
        %v579 = vsub.s32 0, %v578
        %v580 = vrot.slane %v571, %v579
        %v582 = vmul.f32 %v572, %v580
        %v583 = vmul.f32 %v573, %v580
        %v584 = vmul.f32 %v574, %v580
        %v585 = vmul.f32 %v575, %v580
        %586 = vst.msk [vmem:[%s227] sm:$0xff] %vm432, %v582
        %587 = vst.msk [vmem:[%s227 + $0x8] sm:$0xff] %vm432, %v583
        %588 = vst.msk [vmem:[%s227 + $0x10] sm:$0xff] %vm432, %v584
        %589 = vst.msk [vmem:[%s227 + $0x18] sm:$0xff] %vm432, %v585
      $region36: #{tpu_custom_call.1} parent=27 // pred_fallthru
        _
      %s590 = smul.u32 4, %s19
      %p591 = scmp.lt.s32.totalorder %s18, 1
      %s592 = scalar_select %p591, %s18, 1
      %p593 = scmp.lt.s32.totalorder %s590, 3
      %s594 = scalar_select %p593, %s590, 3
      %s595 = smul.addr %s592, 4
      %s596 = sadd.s32 %s594, %s595
      %s597 = smul.addr %s596, 8
      %s598 = scalar_lea.vmem %s2, %s597
      // Predicated region
      $region37: #{tpu_custom_call.1} parent=27 // pred_check
        %p599 = pneg %p108
      $region38: #{tpu_custom_call.1} parent=27 // pred_check_branch
        %601 = sbr.rel (%p599) target = $region40
      $region39: #{tpu_custom_call.1} parent=27 // pred_region
        %s602 = smul.u32 4, %s19
      $region40: #{tpu_custom_call.1} parent=27 // pred_fallthru
        _
    $region28: #{tpu_custom_call.1} parent=5 // pred_fallthru
      _
    %p603 = scmp.le.s32.totalorder 2, %s8
    // Predicated region
    $region41: #{tpu_custom_call.1} parent=5 // pred_check
      %p604 = pneg %p603
    $region42: #{tpu_custom_call.1} parent=5 // pred_check_branch
      %606 = sbr.rel (%p604) target = $region44
    $region43: #{tpu_custom_call.1} parent=5 // pred_region
      %s607 = ssub.s32 %s8, 2
      // Predicated region
      $region45: #{tpu_custom_call.1} parent=43 // pred_check
        %p608 = pneg %p114
      $region46: #{tpu_custom_call.1} parent=43 // pred_check_branch
        %610 = sbr.rel (%p608) target = $region48
      $region47: #{tpu_custom_call.1} parent=43 // pred_region
        %s611 = smul.u32 4, %s22
        %p612 = scmp.lt.s32.totalorder %s21, 1
        %s613 = scalar_select %p612, %s21, 1
        %p614 = scmp.lt.s32.totalorder %s611, 3
        %s615 = scalar_select %p614, %s611, 3
        %s616 = smul.addr %s613, 4
        %s617 = sadd.s32 %s615, %s616
        %s618 = smul.addr %s617, 8
        %s619 = scalar_lea.vmem %s2, %s618
      $region48: #{tpu_custom_call.1} parent=43 // pred_fallthru
        _
    $region44: #{tpu_custom_call.1} parent=5 // pred_fallthru
      _
  $region6: #{tpu_custom_call.1} parent=0 // loop_footer
    %s12 = sadd.s32 1, %s8
  $region7: #{tpu_custom_call.1} parent=0 // loop_footer_branch
    %7 = sbr.rel target = $region3
  $region8: #{tpu_custom_call.1} parent=0 // loop_exit
    _

</llo_original>
